<compile_context>
chip_gen: v7x
topology: tpu7x:2x2x1
jax: 0.10.0
libtpu: 0.0.40
codegen_flags: <defaults>
</compile_context>

<pallas_src>
import functools

import jax
import jax.numpy as jnp
from jax import lax
from jax.experimental import pallas as pl
from jax.experimental.pallas import tpu as pltpu

_VMEM_LIMIT = 40 * 1024 * 1024       # scoped-VMEM cap: safe on v5e/v6e (128 MiB) and v7x (64 MiB)
_BT_VMEM_BUDGET = 12 * 1024 * 1024   # target in-kernel working set when picking images/step


def _round_up(n, m):
    return ((n + m - 1) // m) * m


# ---------------------------------------------------------------------------
# pltpu.roll direction / dtype self-calibration (one eager probe)
# ---------------------------------------------------------------------------
_ROLL_SIGN = None     # +1 if pltpu.roll matches jnp.roll along lanes, else -1
_ROLL_BF16 = False    # True if lane rolls lower directly on bf16 tiles


def _roll_probe_kernel(x_ref, o_ref):
    o_ref[...] = pltpu.roll(x_ref[...], 1, axis=1)


def _probe_roll(dtype):
    x = (jnp.arange(16 * 128, dtype=jnp.int32) % 251).astype(dtype).reshape(16, 128)
    y = pl.pallas_call(
        _roll_probe_kernel,
        out_shape=jax.ShapeDtypeStruct((16, 128), dtype),
    )(x)
    if bool(jnp.all(y == jnp.roll(x, 1, axis=1))):
        return 1
    if bool(jnp.all(y == jnp.roll(x, -1, axis=1))):
        return -1
    return 0


def _calibrate_roll():
    """Probe pltpu.roll once (eagerly, on concrete data) and cache direction/dtype support."""
    global _ROLL_SIGN, _ROLL_BF16
    if _ROLL_SIGN is not None:
        return
    try:
        s = _probe_roll(jnp.bfloat16)
    except Exception:
        s = 0
    if s != 0:
        _ROLL_SIGN, _ROLL_BF16 = s, True
        return
    s = _probe_roll(jnp.float32)
    if s == 0:
        raise RuntimeError("pltpu.roll probe produced unexpected results")
    _ROLL_SIGN, _ROLL_BF16 = s, False


# ---------------------------------------------------------------------------
# Pallas kernels
# ---------------------------------------------------------------------------
def _conv_chain_kernel(*refs, bt, wp, rr, cfg, has_ext, emit_h_after,
                       final_out, gap_inv, roll_sign, roll_bf16):
    """Fused chain of 3x3/stride-1/pad-1 convs on padded-flat (C, Rpad) activations.

    Per layer: build the 9 spatially shifted taps with XLU lane rolls, reduce them with a
    single (Cout, 9*Cin) @ (9*Cin, Rpad) MXU matmul (f32 accumulate), apply folded-BN
    scale/shift, optional ReLU / fused residual, then re-zero the spatial border + lane tail
    so the padded-flat invariant holds for the next layer.  Activations never leave VMEM
    between layers.  `bt` images are processed per grid step (unrolled)."""
    n_layers = len(cfg)
    i = 0
    x_ref = refs[i]; i += 1
    mask_ref = refs[i]; i += 1
    res_ref = None
    if has_ext:
        res_ref = refs[i]; i += 1
    layer_refs = []
    for _ in range(n_layers):
        layer_refs.append((refs[i], refs[i + 1], refs[i + 2]))
        i += 3
    outs = refs[i:]
    if emit_h_after is not None:
        h_ref, out_ref = outs[0], outs[1]
    else:
        h_ref, out_ref = None, outs[0]

    mask = mask_ref[...]                                            # (1, rr) f32
    needs_x32 = any(r in ('input', 'rsub_input') for (_, _, r) in cfg)

    for bi in range(bt):
        x_in = x_ref[bi]
        x32 = x_in.astype(jnp.float32) if needs_x32 else None
        h_bf = x_in if x_in.dtype == jnp.bfloat16 else x_in.astype(jnp.bfloat16)
        acts = []
        for l in range(n_layers):
            relu_l, fused_l, res_l = cfg[l]
            w_ref, s_ref, b_ref = layer_refs[l]

            # 9 shifted taps: xs_t[:, q] = h[:, q + dy*wp + dx]  (lane roll, XLU slot).
            use_bf = roll_bf16 and fused_l
            src = h_bf if use_bf else h_bf.astype(jnp.float32)
            taps = []
            for t in range(9):
                dy, dx = t // 3 - 1, t % 3 - 1
                d = dy * wp + dx
                if d == 0:
                    taps.append(h_bf)
                else:
                    shift = ((-roll_sign) * d) % rr
                    rolled = pltpu.roll(src, shift, axis=1)
                    taps.append(rolled if use_bf else rolled.astype(jnp.bfloat16))

            if fused_l:
                # One MXU matmul with K = 9*Cin (accumulation happens in the MXU).
                stacked = jnp.concatenate(taps, axis=0)             # (9*Cin, rr) bf16
                acc = jnp.dot(w_ref[...], stacked,
                              preferred_element_type=jnp.float32)
            else:
                acc = None                                          # small / unaligned Cin
                for t in range(9):
                    c = jnp.dot(w_ref[t], taps[t],
                                preferred_element_type=jnp.float32)
                    acc = c if acc is None else acc + c

            acc = acc * s_ref[...] + b_ref[...]                     # folded BatchNorm / bias

            if res_l is None:
                if relu_l:
                    acc = jnp.maximum(acc, 0.0)
                acc = acc * mask
            elif res_l == 'rsub_input':                             # E = x - return_image(h)
                acc = x32 - acc * mask
            else:                                                   # residual add + ReLU
                if res_l == 'input':
                    r32 = x32
                elif res_l == 'ext':
                    r32 = res_ref[bi].astype(jnp.float32)
                else:                                               # ('act', k)
                    r32 = acts[res_l[1]].astype(jnp.float32)
                acc = jnp.maximum(acc * mask + r32, 0.0)

            if l < n_layers - 1:
                h_bf = acc.astype(jnp.bfloat16)
                acts.append(h_bf)
                if emit_h_after == l:
                    h_ref[bi] = h_bf.astype(h_ref.dtype)
            else:
                if final_out == 'gap':
                    # fused AdaptiveAvgPool2d((1,1)); border/tail lanes are exactly zero.
                    out_ref[bi] = (jnp.sum(acc, axis=1, keepdims=True)
                                   * gap_inv).astype(out_ref.dtype)
                else:
                    out_ref[bi] = acc.astype(out_ref.dtype)


def _dual_matmul_kernel(cols_ref, dcols_ref, w1_ref, s1_ref, b1_ref,
                        wd_ref, sd_ref, bd_ref, o1_ref, od_ref):
    """Stride-2 BasicBlock front: conv1 (3x3/s2, im2col) + BN + ReLU and the 1x1/s2
    downsample + BN, as two MXU matmuls over a shared lane-dense M axis."""
    a1 = jnp.dot(w1_ref[...], cols_ref[...], preferred_element_type=jnp.float32)
    a1 = jnp.maximum(a1 * s1_ref[...] + b1_ref[...], 0.0)
    o1_ref[...] = a1.astype(o1_ref.dtype)
    ad = jnp.dot(wd_ref[...], dcols_ref[...], preferred_element_type=jnp.float32)
    ad = ad * sd_ref[...] + bd_ref[...]
    od_ref[...] = ad.astype(od_ref.dtype)


def _layernorm_kernel(x_ref, g_ref, b_ref, o_ref):
    x = x_ref[...]
    mu = jnp.mean(x, axis=-1, keepdims=True)
    var = jnp.mean(jnp.square(x - mu), axis=-1, keepdims=True)
    o_ref[...] = (x - mu) * lax.rsqrt(var + 1e-5) * g_ref[...] + b_ref[...]


def _fc_kernel(x_ref, w_ref, b_ref, o_ref):
    # Linear(num_patches*D, 1) as a lane-axis reduction (avoids a 1-column MXU matmul).
    o_ref[...] = jnp.sum(x_ref[...] * w_ref[...], axis=1, keepdims=True) + b_ref[...]


# ---------------------------------------------------------------------------
# Kernel wrappers
# ---------------------------------------------------------------------------
def _pick_bt(nb, per_image_bytes, weight_bytes, budget=_BT_VMEM_BUDGET):
    """Images per grid step: amortize per-step overhead on small feature maps while keeping
    >= 2 grid steps (v7x has 2 TensorCores) and a bounded in-kernel working set."""
    for d in (8, 4, 2, 1):
        if nb % d:
            continue
        if d > 1 and d > nb // 2:
            continue
        if weight_bytes + 3 * d * per_image_bytes <= budget:
            return d
    return 1


def conv_chain(x, layers, h, w, mask, *, ext_res=None, emit_h_after=None,
               final_out='act', final_dtype=jnp.bfloat16, h_dtype=jnp.bfloat16,
               gap_inv_count=None):
    """Run a fused chain of 3x3/s1/p1 conv layers on padded-flat activations.

    x: (nb, C0, Rpad).  Returns the tuple of pallas outputs
    ([activation after layer `emit_h_after`], final result)."""
    _calibrate_roll()
    nb, c0, rr = x.shape
    wp = w + 2
    # Interior pixels never read circularly wrapped lanes: q + d stays inside the
    # (h+2)*(w+2) window for every interior q and |d| <= wp+1; border/tail lanes are
    # re-zeroed by `mask` after every layer.
    assert (h + 2) * (w + 2) <= rr

    cfg = tuple((bool(l['relu']), bool(l['fused']), l['res']) for l in layers)
    couts = [l['scale'].shape[0] for l in layers]
    cins = [(l['w'].shape[1] // 9) if l['fused'] else l['w'].shape[2] for l in layers]

    per_img = rr * (4 * c0 + 2 * 9 * max(cins) + 12 * max(couts))
    if ext_res is not None:
        per_img += 2 * ext_res.shape[1] * rr
    wbytes = sum(l['w'].size * 2 + 8 * l['scale'].shape[0] for l in layers)
    bt = _pick_bt(nb, per_img, wbytes)
    grid = (nb // bt,)

    in_specs = [pl.BlockSpec((bt, c0, rr), lambda b: (b, 0, 0)),
                pl.BlockSpec((1, rr), lambda b: (0, 0))]
    args = [x, mask]
    if ext_res is not None:
        in_specs.append(pl.BlockSpec((bt, ext_res.shape[1], rr), lambda b: (b, 0, 0)))
        args.append(ext_res)
    for l in layers:
        wk = l['w']
        cout = l['scale'].shape[0]
        in_specs.append(pl.BlockSpec(wk.shape, lambda b, _n=wk.ndim: (0,) * _n))
        in_specs.append(pl.BlockSpec((cout, 1), lambda b: (0, 0)))
        in_specs.append(pl.BlockSpec((cout, 1), lambda b: (0, 0)))
        args.extend([wk, l['scale'], l['shift']])

    out_shapes, out_specs = [], []
    if emit_h_after is not None:
        ch = couts[emit_h_after]
        out_shapes.append(jax.ShapeDtypeStruct((nb, ch, rr), h_dtype))
        out_specs.append(pl.BlockSpec((bt, ch, rr), lambda b: (b, 0, 0)))
    if final_out == 'gap':
        out_shapes.append(jax.ShapeDtypeStruct((nb, couts[-1], 1), jnp.float32))
        out_specs.append(pl.BlockSpec((bt, couts[-1], 1), lambda b: (b, 0, 0)))
    else:
        out_shapes.append(jax.ShapeDtypeStruct((nb, couts[-1], rr), final_dtype))
        out_specs.append(pl.BlockSpec((bt, couts[-1], rr), lambda b: (b, 0, 0)))

    kernel = functools.partial(
        _conv_chain_kernel, bt=bt, wp=wp, rr=rr, cfg=cfg,
        has_ext=ext_res is not None, emit_h_after=emit_h_after,
        final_out=final_out,
        gap_inv=0.0 if gap_inv_count is None else float(gap_inv_count),
        roll_sign=_ROLL_SIGN, roll_bf16=_ROLL_BF16)

    return pl.pallas_call(
        kernel,
        out_shape=tuple(out_shapes),
        grid=grid,
        in_specs=in_specs,
        out_specs=tuple(out_specs),
        compiler_params=pltpu.CompilerParams(
            dimension_semantics=("parallel",),
            vmem_limit_bytes=_VMEM_LIMIT),
    )(*args)


def stride2_front(z, h, w, sp):
    """Stride-2 BasicBlock front half (conv1 3x3/s2 + BN + ReLU, downsample 1x1/s2 + BN).

    The image batch is collapsed into the matmul M (lane) axis and padded to a multiple
    of 128 so the kernel's output stores are lane-dense."""
    nb, cin, _ = z.shape
    cols, ho, wo = im2col_s2_3x3(z, h, w)                     # (nb, 9*cin, m)
    dcols, _, _ = subsample_s2(z, h, w)                       # (nb, cin, m)
    m = ho * wo
    mt = nb * m
    cols2 = jnp.transpose(cols, (1, 0, 2)).reshape(9 * cin, mt)
    dcols2 = jnp.transpose(dcols, (1, 0, 2)).reshape(cin, mt)

    tile_m = 512
    mt_pad = _round_up(mt, 128)
    if mt_pad > tile_m:
        mt_pad = _round_up(mt_pad, tile_m)
    else:
        tile_m = mt_pad
    cols2 = jnp.pad(cols2, ((0, 0), (0, mt_pad - mt)))
    dcols2 = jnp.pad(dcols2, ((0, 0), (0, mt_pad - mt)))

    cout = sp['w1'].shape[0]
    o1, od = pl.pallas_call(
        _dual_matmul_kernel,
        out_shape=(jax.ShapeDtypeStruct((cout, mt_pad), jnp.bfloat16),
                   jax.ShapeDtypeStruct((cout, mt_pad), jnp.bfloat16)),
        grid=(mt_pad // tile_m,),
        in_specs=[pl.BlockSpec((9 * cin, tile_m), lambda j: (0, j)),
                  pl.BlockSpec((cin, tile_m), lambda j: (0, j)),
                  pl.BlockSpec(sp['w1'].shape, lambda j: (0, 0)),
                  pl.BlockSpec((cout, 1), lambda j: (0, 0)),
                  pl.BlockSpec((cout, 1), lambda j: (0, 0)),
                  pl.BlockSpec(sp['wd'].shape, lambda j: (0, 0)),
                  pl.BlockSpec((cout, 1), lambda j: (0, 0)),
                  pl.BlockSpec((cout, 1), lambda j: (0, 0))],
        out_specs=(pl.BlockSpec((cout, tile_m), lambda j: (0, j)),
                   pl.BlockSpec((cout, tile_m), lambda j: (0, j))),
        compiler_params=pltpu.CompilerParams(
            dimension_semantics=("parallel",),
            vmem_limit_bytes=_VMEM_LIMIT),
    )(cols2, dcols2, sp['w1'], sp['s1'], sp['b1'], sp['wd'], sp['sd'], sp['bd'])

    def unflatten(y):
        y = y[:, :mt].reshape(cout, nb, m).transpose(1, 0, 2)
        return to_padded_flat(y, ho, wo)

    return unflatten(o1), unflatten(od), ho, wo


def layer_norm(x2d, gamma, beta):
    # tiny (N*B, D) tensor -> single full-array block
    return pl.pallas_call(
        _layernorm_kernel,
        out_shape=jax.ShapeDtypeStruct(x2d.shape, x2d.dtype),
    )(x2d, gamma, beta)


def fc_head(x2d, w_row, bias):
    b, nd = x2d.shape
    return pl.pallas_call(
        _fc_kernel,
        out_shape=jax.ShapeDtypeStruct((b, 1), jnp.float32),
    )(x2d, w_row.reshape(1, nd), bias.reshape(1, 1))


# ---------------------------------------------------------------------------
# Padded-flat layout helpers (cheap XLA glue, small tensors only)
# ---------------------------------------------------------------------------
def _border_mask(h, w, r_pad):
    m = jnp.zeros((h + 2, w + 2), jnp.float32).at[1:h + 1, 1:w + 1].set(1.0)
    m = m.reshape(1, (h + 2) * (w + 2))
    return jnp.pad(m, ((0, 0), (0, r_pad - m.shape[1])))


def pad_to_flat(x_nchw):
    """(NB, C, H, W) -> (NB, C, Rpad) with zero 1-pixel border and zero lane tail."""
    nb, c, h, w = x_nchw.shape
    r = (h + 2) * (w + 2)
    r_pad = _round_up(r, 128)
    xp = jnp.pad(x_nchw, ((0, 0), (0, 0), (1, 1), (1, 1))).reshape(nb, c, r)
    return jnp.pad(xp, ((0, 0), (0, 0), (0, r_pad - r)))


def to_padded_flat(y, ho, wo):
    nb, c, _ = y.shape
    return pad_to_flat(y.reshape(nb, c, ho, wo))


def flat_to_nchw(xf, h, w):
    nb, c, _ = xf.shape
    return xf[:, :, :(h + 2) * (w + 2)].reshape(nb, c, h + 2, w + 2)[:, :, 1:h + 1, 1:w + 1]


def im2col_s2_3x3(zf, h, w):
    """Stride-2 3x3 im2col from a padded-flat activation (only used for the few s2 convs)."""
    nb, c, _ = zf.shape
    hp4 = zf[:, :, :(h + 2) * (w + 2)].reshape(nb, c, h + 2, w + 2)
    ho, wo = h // 2, w // 2
    taps = [hp4[:, :, ky:ky + 2 * ho:2, kx:kx + 2 * wo:2]
            for ky in range(3) for kx in range(3)]
    cols = jnp.stack(taps, axis=1).reshape(nb, 9 * c, ho * wo)
    return cols, ho, wo


def subsample_s2(zf, h, w):
    """Stride-2 1x1 "im2col" (just the strided valid pixels)."""
    nb, c, _ = zf.shape
    hp4 = zf[:, :, :(h + 2) * (w + 2)].reshape(nb, c, h + 2, w + 2)
    ho, wo = h // 2, w // 2
    return hp4[:, :, 1:1 + 2 * ho:2, 1:1 + 2 * wo:2].reshape(nb, c, ho * wo), ho, wo


# ---------------------------------------------------------------------------
# Forward pass (mirrors ResTransformer.forward, inference mode)
# ---------------------------------------------------------------------------
def res_transformer_forward(params, patches_L):
    """patches_L: (num_patches, B, 3, H, W) in NCHW (PyTorch convention)."""
    N, B, C, H, W = patches_L.shape
    nb = N * B
    x = patches_L.reshape(nb, C, H, W)

    xpf = pad_to_flat(x)                                     # (NB, 3, Rpad) f32
    mask0 = _border_mask(H, W, xpf.shape[-1])

    # denoiser (head + n_cbr body convs) + return_image fused into one pallas_call per block:
    #   outputs h = denoiser(x) (bf16) and E = x - return_image(h) (f32).
    den = params["denoiser_chain"]
    h_act, Epf = conv_chain(xpf, den, H, W, mask0,
                            emit_h_after=len(den) - 2,
                            final_dtype=jnp.float32)
    E = flat_to_nchw(Epf, H, W).reshape(N, B, C, H, W)

    # PatchEmbedding: for each layer, stride-2 front (dual matmul) then a fused chain of
    # [block0.conv2 + residual, block1.conv1, block1.conv2 + residual]; the last layer's
    # chain also folds the AdaptiveAvgPool2d((1,1)).
    z, hh, ww = h_act, H, W
    n_pl = len(params["patch_embed"])
    pooled = None
    for li, lp in enumerate(params["patch_embed"]):
        out1, ident, ho, wo = stride2_front(z, hh, ww, lp["front"])
        rr = out1.shape[-1]
        mask = _border_mask(ho, wo, rr)
        last = (li == n_pl - 1)
        outs = conv_chain(out1, lp["chain"], ho, wo, mask, ext_res=ident,
                          final_out=('gap' if last else 'act'),
                          gap_inv_count=(1.0 / (ho * wo)) if last else None)
        if last:
            pooled = outs[-1][..., 0]                        # (N*B, D) f32
        else:
            z, hh, ww = outs[-1], ho, wo

    D = pooled.shape[-1]

    # ReT(x, tgt=x) with 0 decoder layers == decoder_norm(x) == LayerNorm over D
    g, bb = params["ret_norm"]
    normed = layer_norm(pooled, g, bb)                       # (N*B, D)
    feat = jnp.transpose(normed.reshape(N, B, D), (1, 0, 2))  # (B, N, D)

    # fc: Rearrange('b n f -> b (n f)') + Linear(num_patches * D, 1)  (squeeze(2) is a no-op)
    wfc, bfc = params["fc"]
    label = fc_head(feat.reshape(B, N * D), wfc, bfc)        # (B, 1)

    return {"E": E, "label": label}


# ---------------------------------------------------------------------------
# Deterministic parameter construction
# ---------------------------------------------------------------------------
class KeyGen:
    def __init__(self, seed):
        self._key = jax.random.PRNGKey(seed)

    def __call__(self):
        self._key, sub = jax.random.split(self._key)
        return sub


def _to_direct(w):     # OIHW (Cout,Cin,3,3) -> (9, Cout, Cin) bf16, tap-major (per-tap path)
    cout, cin = w.shape[0], w.shape[1]
    return jnp.transpose(w, (2, 3, 0, 1)).reshape(9, cout, cin).astype(jnp.bfloat16)


def _to_im2col(w):     # OIHW (Cout,Cin,3,3) -> (Cout, 9*Cin) bf16, K ordered (tap, cin)
    cout, cin = w.shape[0], w.shape[1]
    return jnp.transpose(w, (0, 2, 3, 1)).reshape(cout, 9 * cin).astype(jnp.bfloat16)


def _mk_layer(w_oihw, scale, shift, *, relu, res=None):
    cout, cin = w_oihw.shape[0], w_oihw.shape[1]
    # Fused K=9*Cin matmul only when Cin is bf16-sublane-tile aligned (16); otherwise the
    # tiny per-tap path (e.g. the 3->C head) avoids unaligned sublane concatenation.
    fused = (cin % 16 == 0)
    wk = _to_im2col(w_oihw) if fused else _to_direct(w_oihw)
    return {"w": wk, "scale": scale.reshape(cout, 1), "shift": shift.reshape(cout, 1),
            "relu": relu, "fused": fused, "res": res}


def init_conv_bn(kg, cin, cout, ksize, bias, bn, bn_eps):
    w = 0.1 * jax.random.normal(kg(), (cout, cin, ksize, ksize), jnp.float32)
    b = (0.1 * jax.random.normal(kg(), (cout,), jnp.float32)
         if bias else jnp.zeros((cout,), jnp.float32))
    if bn:
        gamma = 1.0 + 0.1 * jax.random.normal(kg(), (cout,), jnp.float32)
        beta = 0.1 * jax.random.normal(kg(), (cout,), jnp.float32)
        rmean = 0.1 * jax.random.normal(kg(), (cout,), jnp.float32)
        rvar = jax.random.uniform(kg(), (cout,), jnp.float32, 0.5, 1.5)
        scale = gamma * lax.rsqrt(rvar + bn_eps)
        shift = scale * (b - rmean) + beta
    else:
        scale = jnp.ones((cout,), jnp.float32)
        shift = b
    return w, scale, shift


def build_params(kg, n_channel, n_cbr, n_basicblock, num_patches):
    params = {}

    # denoiser chain: conv(3->C,'CR') + n_cbr * conv(C->C,'CBR', eps=1e-4) + return_image 'C'
    chain = []
    w, s, b = init_conv_bn(kg, 3, n_channel, 3, bias=True, bn=False, bn_eps=0.0)
    chain.append(_mk_layer(w, s, b, relu=True))
    for _ in range(n_cbr):
        w, s, b = init_conv_bn(kg, n_channel, n_channel, 3, bias=True, bn=True, bn_eps=1e-4)
        chain.append(_mk_layer(w, s, b, relu=True))
    w, s, b = init_conv_bn(kg, n_channel, 3, 3, bias=True, bn=False, bn_eps=0.0)
    chain.append(_mk_layer(w, s, b, relu=False, res='rsub_input'))
    params["denoiser_chain"] = chain

    # PatchEmbedding: n_basicblock layers of [BasicBlock(stride=2, downsample), BasicBlock(1)]
    layers = []
    i_dim = n_channel
    for _ in range(n_basicblock):
        o_dim = i_dim * 2
        w1, s1, b1 = init_conv_bn(kg, i_dim, o_dim, 3, bias=False, bn=True, bn_eps=1e-5)
        w2, s2, b2 = init_conv_bn(kg, o_dim, o_dim, 3, bias=False, bn=True, bn_eps=1e-5)
        wd, sd, bd = init_conv_bn(kg, i_dim, o_dim, 1, bias=False, bn=True, bn_eps=1e-5)
        front = {"w1": _to_im2col(w1), "s1": s1.reshape(o_dim, 1), "b1": b1.reshape(o_dim, 1),
                 "wd": wd.reshape(o_dim, i_dim).astype(jnp.bfloat16),
                 "sd": sd.reshape(o_dim, 1), "bd": bd.reshape(o_dim, 1)}
        chain_l = [_mk_layer(w2, s2, b2, relu=False, res='ext')]          # block0.conv2 + ds
        w1b, s1b, b1b = init_conv_bn(kg, o_dim, o_dim, 3, bias=False, bn=True, bn_eps=1e-5)
        w2b, s2b, b2b = init_conv_bn(kg, o_dim, o_dim, 3, bias=False, bn=True, bn_eps=1e-5)
        chain_l.append(_mk_layer(w1b, s1b, b1b, relu=True))               # block1.conv1
        chain_l.append(_mk_layer(w2b, s2b, b2b, relu=False, res=('act', 0)))  # block1.conv2
        layers.append({"front": front, "chain": chain_l})
        i_dim = o_dim
    params["patch_embed"] = layers
    d_model = i_dim

    # nn.Transformer decoder_norm (PyTorch LayerNorm default init: weight=1, bias=0)
    params["ret_norm"] = (jnp.ones((1, d_model), jnp.float32),
                          jnp.zeros((1, d_model), jnp.float32))
    # fc: Linear(num_patches * d_model, 1)
    wfc = 0.1 * jax.random.normal(kg(), (num_patches * d_model,), jnp.float32)
    bfc = 0.1 * jax.random.normal(kg(), (1,), jnp.float32)
    params["fc"] = (wfc, bfc)
    return params, d_model


# ---------------------------------------------------------------------------
if __name__ == "__main__":
    # Small hyper-parameters, structurally identical to the module
    # (original: n_channel=64, n_cbr=18, n_basicblock=3, crop=256, patch=32, pad=64 -> 16 patches).
    n_channel = 8
    n_cbr = 3
    n_basicblock = 2
    crop_size, patch_size, padding_size = 16, 8, 8
    num_patches = (int((crop_size - patch_size) / padding_size) + 1) ** 2  # = 4
    batch = 2

    _calibrate_roll()  # one eager probe: pltpu.roll direction + bf16-roll support

    kg = KeyGen(0)
    params, d_model = build_params(kg, n_channel, n_cbr, n_basicblock, num_patches)

    # patches_L: list of per-patch images in the PyTorch forward; stacked as (N, B, 3, H, W).
    patches_L = jax.random.normal(
        kg(), (num_patches, batch, 3, patch_size, patch_size), jnp.float32)

    fwd = jax.jit(lambda x: res_transformer_forward(params, x))
    out = jax.block_until_ready(fwd(patches_L))

    assert out["label"].shape == (batch, 1)
    assert out["E"].shape == (num_patches, batch, 3, patch_size, patch_size)
    assert bool(jnp.all(jnp.isfinite(out["label"])))
    assert bool(jnp.all(jnp.isfinite(out["E"])))
    print("KERNEL_OK")
</pallas_src>

<mosaic_0001>
module attributes {stable_mosaic.version = 11 : i64} {
  func.func @_roll_probe_kernel(%arg0: memref<16x128xbf16, #tpu.memory_space<vmem>>, %arg1: memref<16x128xbf16, #tpu.memory_space<vmem>>) attributes {dimension_semantics = [], scalar_prefetch = 0 : i64, scratch_operands = 0 : i64, tpu.core_type = #tpu.core_type<tc>} {
    %c0 = arith.constant 0 : index
    %c0_0 = arith.constant 0 : index
    %0 = vector.load %arg0[%c0, %c0_0] : memref<16x128xbf16, #tpu.memory_space<vmem>>, vector<16x128xbf16>
    %c1_i32 = arith.constant 1 : i32
    %1 = tpu.dynamic_rotate %0 by %c1_i32 dim 1 : vector<16x128xbf16>, i32 -> vector<16x128xbf16>
    %c0_1 = arith.constant 0 : index
    %c0_2 = arith.constant 0 : index
    %2 = vector.load %arg1[%c0_1, %c0_2] : memref<16x128xbf16, #tpu.memory_space<vmem>>, vector<16x128xbf16>
    tpu.vector_store %arg1[%c0_1, %c0_2], %1 {strides = array<i32>} : memref<16x128xbf16, #tpu.memory_space<vmem>>, vector<16x128xbf16>,
    return
  }
}

module attributes {stable_mosaic.version = 11 : i64} {
  func.func @_roll_probe_kernel(%arg0: memref<16x128xf32, #tpu.memory_space<vmem>>, %arg1: memref<16x128xf32, #tpu.memory_space<vmem>>) attributes {dimension_semantics = [], scalar_prefetch = 0 : i64, scratch_operands = 0 : i64, tpu.core_type = #tpu.core_type<tc>} {
    %c0 = arith.constant 0 : index
    %c0_0 = arith.constant 0 : index
    %0 = vector.load %arg0[%c0, %c0_0] : memref<16x128xf32, #tpu.memory_space<vmem>>, vector<16x128xf32>
    %c1_i32 = arith.constant 1 : i32
    %1 = tpu.dynamic_rotate %0 by %c1_i32 dim 1 : vector<16x128xf32>, i32 -> vector<16x128xf32>
    %c0_1 = arith.constant 0 : index
    %c0_2 = arith.constant 0 : index
    %2 = vector.load %arg1[%c0_1, %c0_2] : memref<16x128xf32, #tpu.memory_space<vmem>>, vector<16x128xf32>
    tpu.vector_store %arg1[%c0_1, %c0_2], %1 {strides = array<i32>} : memref<16x128xf32, #tpu.memory_space<vmem>>, vector<16x128xf32>,
    return
  }
}

</mosaic_0001>

<llo_original>
// kernel: tpu_custom_call.1
$region0: #{tpu_custom_call.1}
  #allocation0 [shape = 'u32[]', space=smem, size = 0x4, offset = 0x4, fixed_abs, tag = 'smem constant byte address 0x4 - core index']
  #allocation1 [shape = 'u32[144,128]{1,0:T(1,128)}', space=vmem, size = 0x12000, scoped, tag = 'internal scratch']
  %s0 = inlined_call_operand.hbm [shape: f32[16,128], index: 0, kind: input, shape index: {}]
  %s1 = inlined_call_operand.hbm [shape: f32[16,128], index: 1, kind: output, shape index: {}]
  %s2 = sld [smem:[#allocation0]]
  $region18: #{tpu_custom_call.1} parent=0
    _
  %s4 = ssub.s32 1, %s2
  %s5 = scalar_select 0, %s4, %s2
  $region1: #{tpu_custom_call.1} parent=0
    #allocation2 [shape = 'u8[8192]{0}', space=vmem, size = 0x2000, scoped, tag = 'input window, operand 0, single buffered']
    #allocation3 [shape = 's32[1]{0}', space=sflag, size = 0x4, scoped, tag = 'scoped memory for tpu_custom_call.1']
    #allocation4 [shape = 's32[1]{0}', space=sflag, size = 0x4, scoped, tag = 'scoped memory for tpu_custom_call.1']
    #allocation5 [shape = 'u8[8192]{0}', space=vmem, size = 0x2000, scoped, tag = 'output window, operand 0, single buffered']
    %6 = vsyncpa [#allocation3], 0
    %7 = vsyncpa [#allocation4], 0
    // Predicated region
    $region2: #{tpu_custom_call.1} parent=1 // pred_check
      _
    $region3: #{tpu_custom_call.1} parent=1 // pred_check_branch
      %9 = sbr.rel (0) target = $region5
    $region4: #{tpu_custom_call.1} parent=1 // pred_region
      %s11 = ssub.s32 256, 256
      %12 = vsyncadd [#allocation3], %s11
      %s13 = sshll.u32 [#allocation2], 4
      %s14 = int_to_ptr.vmem [resolvable:$true] %s13
      %19 = dma.hbm_to_vmem [thread:$0]  %s0, 256, %s14, [#allocation3], 128, 128, 8
    $region5: #{tpu_custom_call.1} parent=1 // pred_fallthru
      _
    // Predicated region
    $region6: #{tpu_custom_call.1} parent=1 // pred_check
      _
    $region7: #{tpu_custom_call.1} parent=1 // pred_check_branch
      %21 = sbr.rel (0) target = $region9
    $region8: #{tpu_custom_call.1} parent=1 // pred_region
      %22 = dma.done [#allocation3], 256
    $region9: #{tpu_custom_call.1} parent=1 // pred_fallthru
      _
    %v23 = vld [vmem:[#allocation2] sm:$0xff]
    %v24 = vld [vmem:[#allocation2 + $0x8] sm:$0xff]
    %25 = vrot.lane.b32.xlu0 %v23, 1
    %v26 = vpop.permute.xlu0 %25
    %27 = vrot.lane.b32.xlu0 %v24, 1
    %v28 = vpop.permute.xlu0 %27
    %29 = vst [vmem:[#allocation5] sm:$0xff] %v26
    %30 = vst [vmem:[#allocation5 + $0x8] sm:$0xff] %v28
    // Predicated region
    $region10: #{tpu_custom_call.1} parent=1 // pred_check
      _
    $region11: #{tpu_custom_call.1} parent=1 // pred_check_branch
      %32 = sbr.rel (0) target = $region13
    $region12: #{tpu_custom_call.1} parent=1 // pred_region
      %s34 = ssub.s32 256, 256
      %35 = vsyncadd [#allocation4], %s34
      %s36 = sshll.u32 [#allocation5], 4
      %s37 = int_to_ptr.vmem [resolvable:$true] %s36
      %42 = dma.vmem_to_hbm [thread:$0]  %s37, 256, %s1, [#allocation4], 128, 128, 8
    $region13: #{tpu_custom_call.1} parent=1 // pred_fallthru
      _
    // Predicated region
    $region14: #{tpu_custom_call.1} parent=1 // pred_check
      _
    $region15: #{tpu_custom_call.1} parent=1 // pred_check_branch
      %44 = sbr.rel (0) target = $region17
    $region16: #{tpu_custom_call.1} parent=1 // pred_region
      %45 = dma.done [#allocation4], 256
    $region17: #{tpu_custom_call.1} parent=1 // pred_fallthru
      _
    %46 = vsyncpa [#allocation3], 1
    %47 = vsyncpa [#allocation4], 1

</llo_original>
